<compile_context>
chip_gen: v5e
topology: v5e:2x2
jax: 0.10.0
libtpu: 0.0.40
codegen_flags: <defaults>
</compile_context>

<pallas_src>
import jax
import jax.numpy as jnp
from jax.experimental import pallas as pl
from jax.experimental.pallas import tpu as pltpu


def _autoencoder_kernel(x_ref,
                        we1_ref, be1_ref, we2_ref, be2_ref,
                        wd1_ref, bd1_ref, wd2_ref, bd2_ref,
                        emb_ref, rec_ref):
    cdt = we1_ref.dtype          # compute (MXU input) dtype, e.g. bfloat16
    x = x_ref[...].astype(cdt)   # in-kernel cast: VPU is free here (HBM-bound)

    # ---- encoder ----
    h1 = jnp.dot(x, we1_ref[...], preferred_element_type=jnp.float32) + be1_ref[...]
    h1 = jnp.maximum(h1, 0.0).astype(cdt)                       # ReLU
    e = jnp.dot(h1, we2_ref[...], preferred_element_type=jnp.float32) + be2_ref[...]

    # ---- self.activation on the embedding ----
    emb = jnp.maximum(e, 0.0)

    # ---- decoder ----
    h2 = jnp.dot(emb.astype(cdt), wd1_ref[...],
                 preferred_element_type=jnp.float32) + bd1_ref[...]
    h2 = jnp.maximum(h2, 0.0).astype(cdt)                       # ReLU
    rec = jnp.dot(h2, wd2_ref[...], preferred_element_type=jnp.float32) + bd2_ref[...]

    # ---- two direct outputs (no packed slab, no wrapper re-slice pass) ----
    emb_ref[...] = emb.astype(emb_ref.dtype)
    rec_ref[...] = rec.astype(rec_ref.dtype)


def _choose_block_b(batch, requested):
    """Pick a batch tile: multiple of 8, keep >= 2 grid steps when possible
    (v7x megacore), and prefer an exact divisor of `batch` so the wrapper
    never needs a whole-batch jnp.pad copy of x."""
    b8 = -(-batch // 8) * 8                       # batch rounded up to 8
    bb = max(8, (int(requested) // 8) * 8)
    bb = min(bb, b8)
    # v7x: keep the grid at least 2 long so both TensorCores get work.
    if b8 >= 16 and -(-b8 // bb) < 2:
        bb = -(-(b8 // 2) // 8) * 8
    # Prefer an exact divisor of `batch` (avoids padding x), but don't shrink
    # the tile by more than ~2x chasing one.
    if batch % bb != 0 and batch % 8 == 0:
        for cand in range(bb, max(8, bb // 2) - 1, -8):
            if batch % cand == 0:
                return cand
    return bb


def simple_autoencoder_forward(x, params, *, block_b=2048,
                               compute_dtype=jnp.bfloat16, out_dtype=None):
    """Run the fused autoencoder kernel.

    x: (B, input_dim) float32
    params: dict with we1, be1, we2, be2, wd1, bd1, wd2, bd2
            (weights stored as (in_features, out_features), biases (1, out)).
    Returns (embedding, reconstructed) just like the PyTorch module.
    """
    B, input_dim = x.shape
    hidden_dim = params["we1"].shape[1]
    embed_dim = params["we2"].shape[1]
    out_dtype = x.dtype if out_dtype is None else out_dtype

    bb = _choose_block_b(B, block_b)
    n_blocks = pl.cdiv(B, bb)
    B_pad = n_blocks * bb

    xp = x
    if B_pad != B:
        # Rare fallback (no divisor found): pad only the tail rows.
        xp = jnp.pad(x, ((0, B_pad - B), (0, 0)))

    # bf16 weights (MXU inputs, tiny one-time cast), f32 biases (added to f32 acc).
    w = {k: params[k].astype(compute_dtype) for k in ("we1", "we2", "wd1", "wd2")}
    b = {k: params[k].astype(jnp.float32) for k in ("be1", "be2", "bd1", "bd2")}

    grid = (n_blocks,)

    x_spec = pl.BlockSpec((bb, input_dim), lambda i: (i, 0))

    def full_spec(arr):
        return pl.BlockSpec(arr.shape, lambda i: (0, 0))

    in_specs = [
        x_spec,
        full_spec(w["we1"]), full_spec(b["be1"]),
        full_spec(w["we2"]), full_spec(b["be2"]),
        full_spec(w["wd1"]), full_spec(b["bd1"]),
        full_spec(w["wd2"]), full_spec(b["bd2"]),
    ]
    out_specs = (pl.BlockSpec((bb, embed_dim), lambda i: (i, 0)),
                 pl.BlockSpec((bb, input_dim), lambda i: (i, 0)))
    out_shape = (jax.ShapeDtypeStruct((B_pad, embed_dim), out_dtype),
                 jax.ShapeDtypeStruct((B_pad, input_dim), out_dtype))

    # Rough double-buffered working set; raise scoped VMEM only when needed
    # (default scoped limit is 16 MiB on v5e, 32 MiB on v6e/v7x).
    out_isz = jnp.dtype(out_dtype).itemsize
    x_isz = jnp.dtype(x.dtype).itemsize
    est = bb * (2 * input_dim * x_isz                              # x double-buffer
                + 2 * (embed_dim + input_dim) * out_isz            # out double-buffers
                + 4 * (2 * hidden_dim + embed_dim + input_dim))    # f32 temporaries
    est += 4 << 20                                                  # headroom
    cp_kwargs = dict(dimension_semantics=("parallel",))
    if est > (12 << 20):
        cp_kwargs["vmem_limit_bytes"] = int(min(est, 64 << 20))

    emb, rec = pl.pallas_call(
        _autoencoder_kernel,
        out_shape=out_shape,
        grid_spec=pl.GridSpec(grid=grid, in_specs=in_specs, out_specs=out_specs),
        compiler_params=pltpu.CompilerParams(**cp_kwargs),
    )(xp,
      w["we1"], b["be1"], w["we2"], b["be2"],
      w["wd1"], b["bd1"], w["wd2"], b["bd2"])

    if B_pad != B:
        emb = emb[:B]
        rec = rec[:B]
    return emb, rec


def init_params(key, input_dim=64, hidden_dim=48, embed_dim=32):
    """PyTorch-style uniform(-1/sqrt(fan_in), 1/sqrt(fan_in)) init.

    Weights stored as (in_features, out_features); biases as (1, out_features).
    """
    def linear(k, fan_in, fan_out):
        kw, kb = jax.random.split(k)
        bound = 1.0 / jnp.sqrt(fan_in)
        w = jax.random.uniform(kw, (fan_in, fan_out), jnp.float32, -bound, bound)
        bvec = jax.random.uniform(kb, (1, fan_out), jnp.float32, -bound, bound)
        return w, bvec

    k1, k2, k3, k4 = jax.random.split(key, 4)
    we1, be1 = linear(k1, input_dim, hidden_dim)
    we2, be2 = linear(k2, hidden_dim, embed_dim)
    wd1, bd1 = linear(k3, embed_dim, hidden_dim)
    wd2, bd2 = linear(k4, hidden_dim, input_dim)
    return dict(we1=we1, be1=be1, we2=we2, be2=be2,
                wd1=wd1, bd1=bd1, wd2=wd2, bd2=bd2)


def reference_forward(x, p, compute_dtype=jnp.bfloat16):
    """Pure-JAX reference with the same bf16-input / f32-accumulate scheme."""
    cd = compute_dtype
    xc = x.astype(cd)
    h1 = jnp.maximum(
        jnp.dot(xc, p["we1"].astype(cd), preferred_element_type=jnp.float32)
        + p["be1"], 0.0)
    emb = jnp.maximum(
        jnp.dot(h1.astype(cd), p["we2"].astype(cd),
                preferred_element_type=jnp.float32) + p["be2"], 0.0)
    h2 = jnp.maximum(
        jnp.dot(emb.astype(cd), p["wd1"].astype(cd),
                preferred_element_type=jnp.float32) + p["bd1"], 0.0)
    rec = (jnp.dot(h2.astype(cd), p["wd2"].astype(cd),
                   preferred_element_type=jnp.float32) + p["bd2"])
    return emb.astype(x.dtype), rec.astype(x.dtype)


if __name__ == "__main__":
    key = jax.random.PRNGKey(0)
    kx, kp = jax.random.split(key)

    B, input_dim, hidden_dim, embed_dim = 256, 64, 48, 32
    x = jax.random.normal(kx, (B, input_dim), dtype=jnp.float32)
    params = init_params(kp, input_dim, hidden_dim, embed_dim)

    # Default block_b=2048 collapses to 128 here (>=2 grid steps, divides B),
    # exercising batch tiling / double-buffering even at this small demo size.
    emb, rec = simple_autoencoder_forward(x, params)
    jax.block_until_ready((emb, rec))

    emb_ref, rec_ref = reference_forward(x, params)
    assert emb.shape == (B, embed_dim) and rec.shape == (B, input_dim)
    assert bool(jnp.all(emb >= 0.0))
    assert jnp.allclose(emb, emb_ref, atol=1e-2, rtol=1e-2)
    assert jnp.allclose(rec, rec_ref, atol=1e-2, rtol=1e-2)

    print("KERNEL_OK")
</pallas_src>

<mosaic_0001>
module attributes {stable_mosaic.version = 11 : i64} {
  func.func @_autoencoder_kernel(%arg0: i32, %arg1: memref<128x64xf32, #tpu.memory_space<vmem>>, %arg2: memref<64x48xbf16, #tpu.memory_space<vmem>>, %arg3: memref<1x48xf32, #tpu.memory_space<vmem>>, %arg4: memref<48x32xbf16, #tpu.memory_space<vmem>>, %arg5: memref<1x32xf32, #tpu.memory_space<vmem>>, %arg6: memref<32x48xbf16, #tpu.memory_space<vmem>>, %arg7: memref<1x48xf32, #tpu.memory_space<vmem>>, %arg8: memref<48x64xbf16, #tpu.memory_space<vmem>>, %arg9: memref<1x64xf32, #tpu.memory_space<vmem>>, %arg10: memref<128x32xf32, #tpu.memory_space<vmem>>, %arg11: memref<128x64xf32, #tpu.memory_space<vmem>>) attributes {dimension_semantics = [#tpu.dimension_semantics<parallel>], iteration_bounds = array<i64: 2>, scalar_prefetch = 0 : i64, scratch_operands = 0 : i64, tpu.core_type = #tpu.core_type<tc>, window_params = [{transform_indices = @transform_0, window_bounds = array<i64: 128, 64>}, {pipeline_mode = #tpu.pipeline_mode<synchronous>, transform_indices = @transform_1, window_bounds = array<i64: 64, 48>}, {pipeline_mode = #tpu.pipeline_mode<synchronous>, transform_indices = @transform_2, window_bounds = array<i64: 1, 48>}, {pipeline_mode = #tpu.pipeline_mode<synchronous>, transform_indices = @transform_3, window_bounds = array<i64: 48, 32>}, {pipeline_mode = #tpu.pipeline_mode<synchronous>, transform_indices = @transform_4, window_bounds = array<i64: 1, 32>}, {pipeline_mode = #tpu.pipeline_mode<synchronous>, transform_indices = @transform_5, window_bounds = array<i64: 32, 48>}, {pipeline_mode = #tpu.pipeline_mode<synchronous>, transform_indices = @transform_6, window_bounds = array<i64: 1, 48>}, {pipeline_mode = #tpu.pipeline_mode<synchronous>, transform_indices = @transform_7, window_bounds = array<i64: 48, 64>}, {pipeline_mode = #tpu.pipeline_mode<synchronous>, transform_indices = @transform_8, window_bounds = array<i64: 1, 64>}, {transform_indices = @transform_9, window_bounds = array<i64: 128, 32>}, {transform_indices = @transform_10, window_bounds = array<i64: 128, 64>}]} {
    %c0 = arith.constant 0 : index
    %c0_0 = arith.constant 0 : index
    %0 = vector.load %arg1[%c0, %c0_0] : memref<128x64xf32, #tpu.memory_space<vmem>>, vector<128x64xf32>
    %1 = arith.truncf %0 : vector<128x64xf32> to vector<128x64xbf16>
    %c0_1 = arith.constant 0 : index
    %c0_2 = arith.constant 0 : index
    %2 = vector.load %arg2[%c0_1, %c0_2] : memref<64x48xbf16, #tpu.memory_space<vmem>>, vector<64x48xbf16>
    %cst = arith.constant dense<0.000000e+00> : vector<128x48xf32>
    %3 = tpu.matmul %1, %2, %cst {dimension_numbers = #tpu.dot_dimension_numbers<[1], [0], [0], [1], [0, 0, 1, 1], [], []>} : vector<128x64xbf16>, vector<64x48xbf16>, vector<128x48xf32> -> vector<128x48xf32>
    %c0_3 = arith.constant 0 : index
    %c0_4 = arith.constant 0 : index
    %4 = vector.load %arg3[%c0_3, %c0_4] : memref<1x48xf32, #tpu.memory_space<vmem>>, vector<1x48xf32>
    %5 = vector.broadcast %4 : vector<1x48xf32> to vector<128x48xf32>
    %6 = arith.addf %3, %5 : vector<128x48xf32>
    %cst_5 = arith.constant 0.000000e+00 : f32
    %7 = vector.broadcast %cst_5 : f32 to vector<128x48xf32>
    %8 = arith.maximumf %6, %7 : vector<128x48xf32>
    %9 = arith.truncf %8 : vector<128x48xf32> to vector<128x48xbf16>
    %c0_6 = arith.constant 0 : index
    %c0_7 = arith.constant 0 : index
    %10 = vector.load %arg4[%c0_6, %c0_7] : memref<48x32xbf16, #tpu.memory_space<vmem>>, vector<48x32xbf16>
    %cst_8 = arith.constant dense<0.000000e+00> : vector<128x32xf32>
    %11 = tpu.matmul %9, %10, %cst_8 {dimension_numbers = #tpu.dot_dimension_numbers<[1], [0], [0], [1], [0, 0, 1, 1], [], []>} : vector<128x48xbf16>, vector<48x32xbf16>, vector<128x32xf32> -> vector<128x32xf32>
    %c0_9 = arith.constant 0 : index
    %c0_10 = arith.constant 0 : index
    %12 = vector.load %arg5[%c0_9, %c0_10] : memref<1x32xf32, #tpu.memory_space<vmem>>, vector<1x32xf32>
    %13 = vector.broadcast %12 : vector<1x32xf32> to vector<128x32xf32>
    %14 = arith.addf %11, %13 : vector<128x32xf32>
    %cst_11 = arith.constant 0.000000e+00 : f32
    %15 = vector.broadcast %cst_11 : f32 to vector<128x32xf32>
    %16 = arith.maximumf %14, %15 : vector<128x32xf32>
    %17 = arith.truncf %16 : vector<128x32xf32> to vector<128x32xbf16>
    %c0_12 = arith.constant 0 : index
    %c0_13 = arith.constant 0 : index
    %18 = vector.load %arg6[%c0_12, %c0_13] : memref<32x48xbf16, #tpu.memory_space<vmem>>, vector<32x48xbf16>
    %cst_14 = arith.constant dense<0.000000e+00> : vector<128x48xf32>
    %19 = tpu.matmul %17, %18, %cst_14 {dimension_numbers = #tpu.dot_dimension_numbers<[1], [0], [0], [1], [0, 0, 1, 1], [], []>} : vector<128x32xbf16>, vector<32x48xbf16>, vector<128x48xf32> -> vector<128x48xf32>
    %c0_15 = arith.constant 0 : index
    %c0_16 = arith.constant 0 : index
    %20 = vector.load %arg7[%c0_15, %c0_16] : memref<1x48xf32, #tpu.memory_space<vmem>>, vector<1x48xf32>
    %21 = vector.broadcast %20 : vector<1x48xf32> to vector<128x48xf32>
    %22 = arith.addf %19, %21 : vector<128x48xf32>
    %cst_17 = arith.constant 0.000000e+00 : f32
    %23 = vector.broadcast %cst_17 : f32 to vector<128x48xf32>
    %24 = arith.maximumf %22, %23 : vector<128x48xf32>
    %25 = arith.truncf %24 : vector<128x48xf32> to vector<128x48xbf16>
    %c0_18 = arith.constant 0 : index
    %c0_19 = arith.constant 0 : index
    %26 = vector.load %arg8[%c0_18, %c0_19] : memref<48x64xbf16, #tpu.memory_space<vmem>>, vector<48x64xbf16>
    %cst_20 = arith.constant dense<0.000000e+00> : vector<128x64xf32>
    %27 = tpu.matmul %25, %26, %cst_20 {dimension_numbers = #tpu.dot_dimension_numbers<[1], [0], [0], [1], [0, 0, 1, 1], [], []>} : vector<128x48xbf16>, vector<48x64xbf16>, vector<128x64xf32> -> vector<128x64xf32>
    %c0_21 = arith.constant 0 : index
    %c0_22 = arith.constant 0 : index
    %28 = vector.load %arg9[%c0_21, %c0_22] : memref<1x64xf32, #tpu.memory_space<vmem>>, vector<1x64xf32>
    %29 = vector.broadcast %28 : vector<1x64xf32> to vector<128x64xf32>
    %30 = arith.addf %27, %29 : vector<128x64xf32>
    %c0_23 = arith.constant 0 : index
    %c0_24 = arith.constant 0 : index
    %31 = vector.load %arg10[%c0_23, %c0_24] : memref<128x32xf32, #tpu.memory_space<vmem>>, vector<128x32xf32>
    tpu.vector_store %arg10[%c0_23, %c0_24], %16 {strides = array<i32>} : memref<128x32xf32, #tpu.memory_space<vmem>>, vector<128x32xf32>,
    %c0_25 = arith.constant 0 : index
    %c0_26 = arith.constant 0 : index
    %32 = vector.load %arg11[%c0_25, %c0_26] : memref<128x64xf32, #tpu.memory_space<vmem>>, vector<128x64xf32>
    tpu.vector_store %arg11[%c0_25, %c0_26], %30 {strides = array<i32>} : memref<128x64xf32, #tpu.memory_space<vmem>>, vector<128x64xf32>,
    return
  }
  func.func @transform_0(%arg0: i32) -> (i32, i32) {
    %c0_i32 = arith.constant 0 : i32
    %c0_i32_0 = arith.constant 0 : i32
    return %arg0, %c0_i32 : i32, i32
  }
  func.func @transform_1(%arg0: i32) -> (i32, i32) {
    %c0_i32 = arith.constant 0 : i32
    %c0_i32_0 = arith.constant 0 : i32
    %c0_i32_1 = arith.constant 0 : i32
    return %c0_i32, %c0_i32_0 : i32, i32
  }
  func.func @transform_2(%arg0: i32) -> (i32, i32) {
    %c0_i32 = arith.constant 0 : i32
    %c0_i32_0 = arith.constant 0 : i32
    %c0_i32_1 = arith.constant 0 : i32
    return %c0_i32, %c0_i32_0 : i32, i32
  }
  func.func @transform_3(%arg0: i32) -> (i32, i32) {
    %c0_i32 = arith.constant 0 : i32
    %c0_i32_0 = arith.constant 0 : i32
    %c0_i32_1 = arith.constant 0 : i32
    return %c0_i32, %c0_i32_0 : i32, i32
  }
  func.func @transform_4(%arg0: i32) -> (i32, i32) {
    %c0_i32 = arith.constant 0 : i32
    %c0_i32_0 = arith.constant 0 : i32
    %c0_i32_1 = arith.constant 0 : i32
    return %c0_i32, %c0_i32_0 : i32, i32
  }
  func.func @transform_5(%arg0: i32) -> (i32, i32) {
    %c0_i32 = arith.constant 0 : i32
    %c0_i32_0 = arith.constant 0 : i32
    %c0_i32_1 = arith.constant 0 : i32
    return %c0_i32, %c0_i32_0 : i32, i32
  }
  func.func @transform_6(%arg0: i32) -> (i32, i32) {
    %c0_i32 = arith.constant 0 : i32
    %c0_i32_0 = arith.constant 0 : i32
    %c0_i32_1 = arith.constant 0 : i32
    return %c0_i32, %c0_i32_0 : i32, i32
  }
  func.func @transform_7(%arg0: i32) -> (i32, i32) {
    %c0_i32 = arith.constant 0 : i32
    %c0_i32_0 = arith.constant 0 : i32
    %c0_i32_1 = arith.constant 0 : i32
    return %c0_i32, %c0_i32_0 : i32, i32
  }
  func.func @transform_8(%arg0: i32) -> (i32, i32) {
    %c0_i32 = arith.constant 0 : i32
    %c0_i32_0 = arith.constant 0 : i32
    %c0_i32_1 = arith.constant 0 : i32
    return %c0_i32, %c0_i32_0 : i32, i32
  }
  func.func @transform_9(%arg0: i32) -> (i32, i32) {
    %c0_i32 = arith.constant 0 : i32
    %c0_i32_0 = arith.constant 0 : i32
    return %arg0, %c0_i32 : i32, i32
  }
  func.func @transform_10(%arg0: i32) -> (i32, i32) {
    %c0_i32 = arith.constant 0 : i32
    %c0_i32_0 = arith.constant 0 : i32
    return %arg0, %c0_i32 : i32, i32
  }
}

</mosaic_0001>

<llo_original>
// kernel: tpu_custom_call.1
$region0: #{tpu_custom_call.1}
  #allocation0 [shape = 'u32[]', space=smem, size = 0x4, offset = 0x4, fixed_abs, tag = 'smem constant byte address 0x4 - core index']
  #allocation1 [shape = 'u32[72,128]{1,0:T(1,128)}', space=vmem, size = 0x9000, scoped, tag = 'internal scratch']
  %s0 = inlined_call_operand.vmem [shape: f32[256,64], index: 0, kind: input, shape index: {}]
  %s1 = inlined_call_operand.vmem [shape: bf16[64,48], index: 1, kind: input, shape index: {}]
  %s2 = inlined_call_operand.vmem [shape: f32[1,48], index: 2, kind: input, shape index: {}]
  %s3 = inlined_call_operand.vmem [shape: bf16[48,32], index: 3, kind: input, shape index: {}]
  %s4 = inlined_call_operand.vmem [shape: f32[1,32], index: 4, kind: input, shape index: {}]
  %s5 = inlined_call_operand.vmem [shape: bf16[32,48], index: 5, kind: input, shape index: {}]
  %s6 = inlined_call_operand.vmem [shape: f32[1,48], index: 6, kind: input, shape index: {}]
  %s7 = inlined_call_operand.vmem [shape: bf16[48,64], index: 7, kind: input, shape index: {}]
  %s8 = inlined_call_operand.vmem [shape: f32[1,64], index: 8, kind: input, shape index: {}]
  %s9 = inlined_call_operand.vmem [shape: f32[256,32], index: 9, kind: output, shape index: {0}]
  %s10 = inlined_call_operand.vmem [shape: f32[256,64], index: 10, kind: output, shape index: {1}]
  %11 = xla_tuple %s9, %s10
  %s12 = sld [smem:[#allocation0]]
  $region77: #{tpu_custom_call.1} parent=0
    _
  %s14 = ssub.s32 1, %s12
  %s15 = scalar_select 0, %s14, %s12
  loop: start=0, step=1, limit=4
  $region2: #{tpu_custom_call.1} parent=0 // loop_pre_header
    _
  $region3: #{tpu_custom_call.1} parent=0 // loop_header
    %s17 = sphi 0, %s21
    %p18 = scmp.ge.s32.totalorder %s17, 4
    %s27 = sphi 0, %s29
    %s30 = sphi 0, %s27
    %s31 = sphi 0, %s30
    %s47 = sphi 0, %s31
    %s51 = sphi 0, %s51
    %s53 = sphi 0, %s51
    %s54 = sphi 0, %s53
    %s68 = sphi 0, %s54
    %s72 = sphi 0, %s72
    %s74 = sphi 0, %s72
    %s75 = sphi 0, %s74
    %s89 = sphi 0, %s75
    %s93 = sphi 0, %s93
    %s95 = sphi 0, %s93
    %s96 = sphi 0, %s95
    %s110 = sphi 0, %s96
    %s114 = sphi 0, %s114
    %s116 = sphi 0, %s114
    %s117 = sphi 0, %s116
    %s131 = sphi 0, %s117
    %s135 = sphi 0, %s135
    %s137 = sphi 0, %s135
    %s138 = sphi 0, %s137
    %s152 = sphi 0, %s138
    %s156 = sphi 0, %s156
    %s158 = sphi 0, %s156
    %s159 = sphi 0, %s158
    %s173 = sphi 0, %s159
    %s177 = sphi 0, %s177
    %s179 = sphi 0, %s177
    %s180 = sphi 0, %s179
    %s194 = sphi 0, %s180
    %s198 = sphi 0, %s198
    %s200 = sphi 0, %s198
    %s201 = sphi 0, %s200
    %s215 = sphi 0, %s201
    %s221 = sphi 0, %s223
    %s224 = sphi 0, %s221
    %s225 = sphi 0, %s224
    %s241 = sphi 0, %s225
    %s247 = sphi 0, %s249
    %s250 = sphi 0, %s247
    %s251 = sphi 0, %s250
    %s267 = sphi 0, %s251
  $region4: #{tpu_custom_call.1} parent=0 // loop_header_branch
    %20 = sbr.rel (%p18) target = $region8
  $region5: #{tpu_custom_call.1} parent=0 // loop_body
    %s22 = ssub.s32 %s17, 1
    %s23 = ssub.s32 %s17, 2
    %s24 = sadd.s32 %s17, 1
    %s25 = ssub.s32 %s17, %s24
    %p26 = scmp.eq.s32.totalorder %s25, 0
    %s28 = sadd.s32 %s27, 1
    %s29 = scalar_select %p26, %s27, %s28
    %p32 = pneg %p26
    %p33 = scmp.eq.s32.totalorder %s17, 1
    %p34 = por %p32, %p33
    %p35 = scmp.ne.s32.totalorder %s27, %s30
    %p36 = scmp.eq.s32.totalorder %s17, 0
    %p37 = por %p35, %p36
    %p38 = scmp.ne.s32.totalorder %s27, %s30
    %p39 = scmp.eq.s32.totalorder %s22, 1
    %p40 = por %p38, %p39
    %p41 = scmp.ne.s32.totalorder %s30, %s31
    %p42 = scmp.eq.s32.totalorder %s22, 0
    %p43 = por %p41, %p42
    %p44 = scmp.ne.s32.totalorder %s30, %s31
    %p45 = scmp.eq.s32.totalorder %s23, 1
    %p46 = por %p44, %p45
    %p48 = scmp.ne.s32.totalorder %s31, %s47
    %p49 = scmp.eq.s32.totalorder %s23, 0
    %p50 = por %p48, %p49
    %s52 = sadd.s32 %s51, 1
    %p55 = scmp.eq.s32.totalorder %s17, 1
    %p56 = scmp.ne.s32.totalorder %s51, %s53
    %p57 = scmp.eq.s32.totalorder %s17, 0
    %p58 = por %p56, %p57
    %p59 = scmp.ne.s32.totalorder %s51, %s53
    %p60 = scmp.eq.s32.totalorder %s22, 1
    %p61 = por %p59, %p60
    %p62 = scmp.ne.s32.totalorder %s53, %s54
    %p63 = scmp.eq.s32.totalorder %s22, 0
    %p64 = por %p62, %p63
    %p65 = scmp.ne.s32.totalorder %s53, %s54
    %p66 = scmp.eq.s32.totalorder %s23, 1
    %p67 = por %p65, %p66
    %p69 = scmp.ne.s32.totalorder %s54, %s68
    %p70 = scmp.eq.s32.totalorder %s23, 0
    %p71 = por %p69, %p70
    %s73 = sadd.s32 %s72, 1
    %p76 = scmp.eq.s32.totalorder %s17, 1
    %p77 = scmp.ne.s32.totalorder %s72, %s74
    %p78 = scmp.eq.s32.totalorder %s17, 0
    %p79 = por %p77, %p78
    %p80 = scmp.ne.s32.totalorder %s72, %s74
    %p81 = scmp.eq.s32.totalorder %s22, 1
    %p82 = por %p80, %p81
    %p83 = scmp.ne.s32.totalorder %s74, %s75
    %p84 = scmp.eq.s32.totalorder %s22, 0
    %p85 = por %p83, %p84
    %p86 = scmp.ne.s32.totalorder %s74, %s75
    %p87 = scmp.eq.s32.totalorder %s23, 1
    %p88 = por %p86, %p87
    %p90 = scmp.ne.s32.totalorder %s75, %s89
    %p91 = scmp.eq.s32.totalorder %s23, 0
    %p92 = por %p90, %p91
    %s94 = sadd.s32 %s93, 1
    %p97 = scmp.eq.s32.totalorder %s17, 1
    %p98 = scmp.ne.s32.totalorder %s93, %s95
    %p99 = scmp.eq.s32.totalorder %s17, 0
    %p100 = por %p98, %p99
    %p101 = scmp.ne.s32.totalorder %s93, %s95
    %p102 = scmp.eq.s32.totalorder %s22, 1
    %p103 = por %p101, %p102
    %p104 = scmp.ne.s32.totalorder %s95, %s96
    %p105 = scmp.eq.s32.totalorder %s22, 0
    %p106 = por %p104, %p105
    %p107 = scmp.ne.s32.totalorder %s95, %s96
    %p108 = scmp.eq.s32.totalorder %s23, 1
    %p109 = por %p107, %p108
    %p111 = scmp.ne.s32.totalorder %s96, %s110
    %p112 = scmp.eq.s32.totalorder %s23, 0
    %p113 = por %p111, %p112
    %s115 = sadd.s32 %s114, 1
    %p118 = scmp.eq.s32.totalorder %s17, 1
    %p119 = scmp.ne.s32.totalorder %s114, %s116
    %p120 = scmp.eq.s32.totalorder %s17, 0
    %p121 = por %p119, %p120
    %p122 = scmp.ne.s32.totalorder %s114, %s116
    %p123 = scmp.eq.s32.totalorder %s22, 1
    %p124 = por %p122, %p123
    %p125 = scmp.ne.s32.totalorder %s116, %s117
    %p126 = scmp.eq.s32.totalorder %s22, 0
    %p127 = por %p125, %p126
    %p128 = scmp.ne.s32.totalorder %s116, %s117
    %p129 = scmp.eq.s32.totalorder %s23, 1
    %p130 = por %p128, %p129
    %p132 = scmp.ne.s32.totalorder %s117, %s131
    %p133 = scmp.eq.s32.totalorder %s23, 0
    %p134 = por %p132, %p133
    %s136 = sadd.s32 %s135, 1
    %p139 = scmp.eq.s32.totalorder %s17, 1
    %p140 = scmp.ne.s32.totalorder %s135, %s137
    %p141 = scmp.eq.s32.totalorder %s17, 0
    %p142 = por %p140, %p141
    %p143 = scmp.ne.s32.totalorder %s135, %s137
    %p144 = scmp.eq.s32.totalorder %s22, 1
    %p145 = por %p143, %p144
    %p146 = scmp.ne.s32.totalorder %s137, %s138
    %p147 = scmp.eq.s32.totalorder %s22, 0
    %p148 = por %p146, %p147
    %p149 = scmp.ne.s32.totalorder %s137, %s138
    %p150 = scmp.eq.s32.totalorder %s23, 1
    %p151 = por %p149, %p150
    %p153 = scmp.ne.s32.totalorder %s138, %s152
    %p154 = scmp.eq.s32.totalorder %s23, 0
    %p155 = por %p153, %p154
    %s157 = sadd.s32 %s156, 1
    %p160 = scmp.eq.s32.totalorder %s17, 1
    %p161 = scmp.ne.s32.totalorder %s156, %s158
    %p162 = scmp.eq.s32.totalorder %s17, 0
    %p163 = por %p161, %p162
    %p164 = scmp.ne.s32.totalorder %s156, %s158
    %p165 = scmp.eq.s32.totalorder %s22, 1
    %p166 = por %p164, %p165
    %p167 = scmp.ne.s32.totalorder %s158, %s159
    %p168 = scmp.eq.s32.totalorder %s22, 0
    %p169 = por %p167, %p168
    %p170 = scmp.ne.s32.totalorder %s158, %s159
    %p171 = scmp.eq.s32.totalorder %s23, 1
    %p172 = por %p170, %p171
    %p174 = scmp.ne.s32.totalorder %s159, %s173
    %p175 = scmp.eq.s32.totalorder %s23, 0
    %p176 = por %p174, %p175
    %s178 = sadd.s32 %s177, 1
    %p181 = scmp.eq.s32.totalorder %s17, 1
    %p182 = scmp.ne.s32.totalorder %s177, %s179
    %p183 = scmp.eq.s32.totalorder %s17, 0
    %p184 = por %p182, %p183
    %p185 = scmp.ne.s32.totalorder %s177, %s179
    %p186 = scmp.eq.s32.totalorder %s22, 1
    %p187 = por %p185, %p186
    %p188 = scmp.ne.s32.totalorder %s179, %s180
    %p189 = scmp.eq.s32.totalorder %s22, 0
    %p190 = por %p188, %p189
    %p191 = scmp.ne.s32.totalorder %s179, %s180
    %p192 = scmp.eq.s32.totalorder %s23, 1
    %p193 = por %p191, %p192
    %p195 = scmp.ne.s32.totalorder %s180, %s194
    %p196 = scmp.eq.s32.totalorder %s23, 0
    %p197 = por %p195, %p196
    %s199 = sadd.s32 %s198, 1
    %p202 = scmp.eq.s32.totalorder %s17, 1
    %p203 = scmp.ne.s32.totalorder %s198, %s200
    %p204 = scmp.eq.s32.totalorder %s17, 0
    %p205 = por %p203, %p204
    %p206 = scmp.ne.s32.totalorder %s198, %s200
    %p207 = scmp.eq.s32.totalorder %s22, 1
    %p208 = por %p206, %p207
    %p209 = scmp.ne.s32.totalorder %s200, %s201
    %p210 = scmp.eq.s32.totalorder %s22, 0
    %p211 = por %p209, %p210
    %p212 = scmp.ne.s32.totalorder %s200, %s201
    %p213 = scmp.eq.s32.totalorder %s23, 1
    %p214 = por %p212, %p213
    %p216 = scmp.ne.s32.totalorder %s201, %s215
    %p217 = scmp.eq.s32.totalorder %s23, 0
    %p218 = por %p216, %p217
    %s219 = ssub.s32 %s17, %s24
    %p220 = scmp.eq.s32.totalorder %s219, 0
    %s222 = sadd.s32 %s221, 1
    %s223 = scalar_select %p220, %s221, %s222
    %p226 = pneg %p220
    %p227 = scmp.eq.s32.totalorder %s17, 1
    %p228 = por %p226, %p227
    %p229 = scmp.ne.s32.totalorder %s221, %s224
    %p230 = scmp.eq.s32.totalorder %s17, 0
    %p231 = por %p229, %p230
    %p232 = scmp.ne.s32.totalorder %s221, %s224
    %p233 = scmp.eq.s32.totalorder %s22, 1
    %p234 = por %p232, %p233
    %p235 = scmp.ne.s32.totalorder %s224, %s225
    %p236 = scmp.eq.s32.totalorder %s22, 0
    %p237 = por %p235, %p236
    %p238 = scmp.ne.s32.totalorder %s224, %s225
    %p239 = scmp.eq.s32.totalorder %s23, 1
    %p240 = por %p238, %p239
    %p242 = scmp.ne.s32.totalorder %s225, %s241
    %p243 = scmp.eq.s32.totalorder %s23, 0
    %p244 = por %p242, %p243
    %s245 = ssub.s32 %s17, %s24
    %p246 = scmp.eq.s32.totalorder %s245, 0
    %s248 = sadd.s32 %s247, 1
    %s249 = scalar_select %p246, %s247, %s248
    %p252 = pneg %p246
    %p253 = scmp.eq.s32.totalorder %s17, 1
    %p254 = por %p252, %p253
    %p255 = scmp.ne.s32.totalorder %s247, %s250
    %p256 = scmp.eq.s32.totalorder %s17, 0
    %p257 = por %p255, %p256
    %p258 = scmp.ne.s32.totalorder %s247, %s250
    %p259 = scmp.eq.s32.totalorder %s22, 1
    %p260 = por %p258, %p259
    %p261 = scmp.ne.s32.totalorder %s250, %s251
    %p262 = scmp.eq.s32.totalorder %s22, 0
    %p263 = por %p261, %p262
    %p264 = scmp.ne.s32.totalorder %s250, %s251
    %p265 = scmp.eq.s32.totalorder %s23, 1
    %p266 = por %p264, %p265
    %p268 = scmp.ne.s32.totalorder %s251, %s267
    %p269 = scmp.eq.s32.totalorder %s23, 0
    %p270 = por %p268, %p269
    %p271 = scmp.le.s32.totalorder 1, %s17
    %p272 = scmp.lt.s32.totalorder %s17, 3
    %p273 = pnand %p271, %p272
    %p274 = pneg %p273
    // Predicated region
    $region9: #{tpu_custom_call.1} parent=5 // pred_check
      _
    $region10: #{tpu_custom_call.1} parent=5 // pred_check_branch
      %276 = sbr.rel (%p273) target = $region12
    $region11: #{tpu_custom_call.1} parent=5 // pred_region
      %s277 = ssub.s32 %s17, 1
      // Predicated region
      $region13: #{tpu_custom_call.1} parent=11 // pred_check
        %p278 = pneg %p64
      $region14: #{tpu_custom_call.1} parent=11 // pred_check_branch
        %280 = sbr.rel (%p278) target = $region16
      $region15: #{tpu_custom_call.1} parent=11 // pred_region
        _
      $region16: #{tpu_custom_call.1} parent=11 // pred_fallthru
        _
      // Predicated region
      $region17: #{tpu_custom_call.1} parent=11 // pred_check
        %p281 = pneg %p85
      $region18: #{tpu_custom_call.1} parent=11 // pred_check_branch
        %283 = sbr.rel (%p281) target = $region20
      $region19: #{tpu_custom_call.1} parent=11 // pred_region
        _
      $region20: #{tpu_custom_call.1} parent=11 // pred_fallthru
        _
      // Predicated region
      $region21: #{tpu_custom_call.1} parent=11 // pred_check
        %p284 = pneg %p106
      $region22: #{tpu_custom_call.1} parent=11 // pred_check_branch
        %286 = sbr.rel (%p284) target = $region24
      $region23: #{tpu_custom_call.1} parent=11 // pred_region
        _
      $region24: #{tpu_custom_call.1} parent=11 // pred_fallthru
        _
      // Predicated region
      $region25: #{tpu_custom_call.1} parent=11 // pred_check
        %p287 = pneg %p127
      $region26: #{tpu_custom_call.1} parent=11 // pred_check_branch
        %289 = sbr.rel (%p287) target = $region28
      $region27: #{tpu_custom_call.1} parent=11 // pred_region
        _
      $region28: #{tpu_custom_call.1} parent=11 // pred_fallthru
        _
      // Predicated region
      $region29: #{tpu_custom_call.1} parent=11 // pred_check
        %p290 = pneg %p148
      $region30: #{tpu_custom_call.1} parent=11 // pred_check_branch
        %292 = sbr.rel (%p290) target = $region32
      $region31: #{tpu_custom_call.1} parent=11 // pred_region
        _
      $region32: #{tpu_custom_call.1} parent=11 // pred_fallthru
        _
      // Predicated region
      $region33: #{tpu_custom_call.1} parent=11 // pred_check
        %p293 = pneg %p169
      $region34: #{tpu_custom_call.1} parent=11 // pred_check_branch
        %295 = sbr.rel (%p293) target = $region36
      $region35: #{tpu_custom_call.1} parent=11 // pred_region
        _
      $region36: #{tpu_custom_call.1} parent=11 // pred_fallthru
        _
      // Predicated region
      $region37: #{tpu_custom_call.1} parent=11 // pred_check
        %p296 = pneg %p190
      $region38: #{tpu_custom_call.1} parent=11 // pred_check_branch
        %298 = sbr.rel (%p296) target = $region40
      $region39: #{tpu_custom_call.1} parent=11 // pred_region
        _
      $region40: #{tpu_custom_call.1} parent=11 // pred_fallthru
        _
      // Predicated region
      $region41: #{tpu_custom_call.1} parent=11 // pred_check
        %p299 = pneg %p211
      $region42: #{tpu_custom_call.1} parent=11 // pred_check_branch
        %301 = sbr.rel (%p299) target = $region44
      $region43: #{tpu_custom_call.1} parent=11 // pred_region
        _
      $region44: #{tpu_custom_call.1} parent=11 // pred_fallthru
        _
    $region12: #{tpu_custom_call.1} parent=5 // pred_fallthru
      _
    %p302 = scmp.lt.s32.totalorder %s17, 2
    // Predicated region
    $region45: #{tpu_custom_call.1} parent=5 // pred_check
      %p303 = pneg %p302
    $region46: #{tpu_custom_call.1} parent=5 // pred_check_branch
      %305 = sbr.rel (%p303) target = $region48
    $region47: #{tpu_custom_call.1} parent=5 // pred_region
      // Predicated region
      $region49: #{tpu_custom_call.1} parent=47 // pred_check
        %p306 = pneg %p37
      $region50: #{tpu_custom_call.1} parent=47 // pred_check_branch
        %308 = sbr.rel (%p306) target = $region52
      $region51: #{tpu_custom_call.1} parent=47 // pred_region
        %s309 = smul.u32 16, %s17
        %p310 = scmp.lt.s32.totalorder %s309, 31
        %s311 = scalar_select %p310, %s309, 31
        %s312 = smul.addr %s311, 8
        %s313 = scalar_lea.vmem %s0, %s312
        %s314 = smul.u32 16, %s17
      $region52: #{tpu_custom_call.1} parent=47 // pred_fallthru
        _
    $region48: #{tpu_custom_call.1} parent=5 // pred_fallthru
      _
    %p315 = scmp.le.s32.totalorder 1, %s17
    %p316 = scmp.lt.s32.totalorder %s17, 3
    %p317 = pnand %p315, %p316
    %p318 = pneg %p317
    // Predicated region
    $region53: #{tpu_custom_call.1} parent=5 // pred_check
      _
    $region54: #{tpu_custom_call.1} parent=5 // pred_check_branch
      %320 = sbr.rel (%p317) target = $region56
    $region55: #{tpu_custom_call.1} parent=5 // pred_region
      %s321 = ssub.s32 %s17, 1
      %s322 = smul.u32 16, %s22
      %p323 = scmp.lt.s32.totalorder %s322, 31
      %s324 = scalar_select %p323, %s322, 31
      %s325 = smul.addr %s324, 8
      %s326 = scalar_lea.vmem %s0, %s325
      %p327 = pneg %p43
      %p328 = pneg %p40
      %p329 = pneg %p64
      %p330 = pneg %p61
      %p331 = pneg %p85
      %p332 = pneg %p82
      %p333 = pneg %p106
      %p334 = pneg %p103
      %p335 = pneg %p127
      %p336 = pneg %p124
      %p337 = pneg %p148
      %p338 = pneg %p145
      %p339 = pneg %p169
      %p340 = pneg %p166
      %p341 = pneg %p190
      %p342 = pneg %p187
      %p343 = pneg %p211
      %p344 = pneg %p208
      %p345 = pneg %p237
      %p346 = pneg %p234
      %s347 = smul.u32 16, %s22
      %p348 = scmp.lt.s32.totalorder %s347, 31
      %s349 = scalar_select %p348, %s347, 31
      %s350 = smul.addr %s349, 8
      %s351 = scalar_lea.vmem %s9, %s350
      %p352 = pneg %p263
      %p353 = pneg %p260
      %s354 = smul.u32 16, %s22
      %p355 = scmp.lt.s32.totalorder %s354, 31
      %s356 = scalar_select %p355, %s354, 31
      %s357 = smul.addr %s356, 8
      %s358 = scalar_lea.vmem %s10, %s357
      %s359 = smul.u32 16, %s22
      %p360 = scmp.lt.s32.totalorder %s359, 31
      %s361 = scalar_select %p360, %s359, 31
      %s362 = smul.addr %s361, 8
      %s363 = scalar_lea.vmem %s0, %s362
      %s364 = smul.u32 16, %s22
      %s365 = smul.u32 16, %s22
      %p366 = scmp.lt.s32.totalorder %s365, 31
      %s367 = scalar_select %p366, %s365, 31
      %s368 = smul.addr %s367, 8
      %s369 = scalar_lea.vmem %s9, %s368
      %s370 = smul.u32 16, %s22
      %s371 = smul.u32 16, %s22
      %p372 = scmp.lt.s32.totalorder %s371, 31
      %s373 = scalar_select %p372, %s371, 31
      %s374 = smul.addr %s373, 8
      %s375 = scalar_lea.vmem %s10, %s374
      %s376 = smul.u32 16, %s22
      %v378 = vld [vmem:[%s363] sm:$0xff]
      %v379 = vld [vmem:[%s363 + $0x8] sm:$0xff]
      %v380 = vld [vmem:[%s363 + $0x10] sm:$0xff]
      %v381 = vld [vmem:[%s363 + $0x18] sm:$0xff]
      %v382 = vld [vmem:[%s363 + $0x20] sm:$0xff]
      %v383 = vld [vmem:[%s363 + $0x28] sm:$0xff]
      %v384 = vld [vmem:[%s363 + $0x30] sm:$0xff]
      %v385 = vld [vmem:[%s363 + $0x38] sm:$0xff]
      %v386 = vld [vmem:[%s363 + $0x40] sm:$0xff]
      %v387 = vld [vmem:[%s363 + $0x48] sm:$0xff]
      %v388 = vld [vmem:[%s363 + $0x50] sm:$0xff]
      %v389 = vld [vmem:[%s363 + $0x58] sm:$0xff]
      %v390 = vld [vmem:[%s363 + $0x60] sm:$0xff]
      %v391 = vld [vmem:[%s363 + $0x68] sm:$0xff]
      %v392 = vld [vmem:[%s363 + $0x70] sm:$0xff]
      %v393 = vld [vmem:[%s363 + $0x78] sm:$0xff]
      %v394 = vpack.c.bf16 %v379, %v378
      %v395 = vpack.c.bf16 %v381, %v380
      %v396 = vpack.c.bf16 %v383, %v382
      %v397 = vpack.c.bf16 %v385, %v384
      %v398 = vpack.c.bf16 %v387, %v386
      %v399 = vpack.c.bf16 %v389, %v388
      %v400 = vpack.c.bf16 %v391, %v390
      %v401 = vpack.c.bf16 %v393, %v392
      %v402 = vld [vmem:[%s1] sm:$0xf]
      %v403 = vld [vmem:[%s1 + $0x4] sm:$0xf]
      %v404 = vld [vmem:[%s1 + $0x8] sm:$0xf]
      %v405 = vld [vmem:[%s1 + $0xc] sm:$0xf]
      %v406 = vld [vmem:[%s1 + $0x10] sm:$0xf]
      %v407 = vld [vmem:[%s1 + $0x14] sm:$0xf]
      %v408 = vld [vmem:[%s1 + $0x18] sm:$0xf]
      %v409 = vld [vmem:[%s1 + $0x1c] sm:$0xf]
      %v410 = vld [vmem:[%s2] sm:$0x1]
      %v412 = vperm.slane %v410, 0
      %v422 = vunpack.c.l.b16 %v402
      %v423 = vunpack.c.l.b16 %v403
      %v424 = vunpack.c.l.b16 %v404
      %v425 = vunpack.c.l.b16 %v405
      %v426 = vunpack.c.l.b16 %v406
      %v427 = vunpack.c.l.b16 %v407
      %v428 = vunpack.c.l.b16 %v408
      %v429 = vunpack.c.l.b16 %v409
      %v430 = vpack.c.b16 %v423, %v422
      %v431 = vpack.c.b16 %v425, %v424
      %v432 = vpack.c.b16 %v427, %v426
      %v433 = vpack.c.b16 %v429, %v428
      %vm438 = vcmask 523264
      %v440 = vsel %vm438, %v394, 0
      %v443 = vsel %vm438, %v395, 0
      %v446 = vsel %vm438, %v396, 0
      %v449 = vsel %vm438, %v397, 0
      %v452 = vsel %vm438, %v398, 0
      %v455 = vsel %vm438, %v399, 0
      %v458 = vsel %vm438, %v400, 0
      %v461 = vsel %vm438, %v401, 0
      %463 = vmatpush.bf16.msra.mxu0 0
      %464 = vmatpush.bf16.msra.mxu0 0
      %465 = vmatpush.bf16.msra.mxu0 0
      %466 = vmatpush.bf16.msra.mxu0 0
      %467 = vmatpush.bf16.msra.mxu0 %v433
      %468 = vmatpush.bf16.msra.mxu0 %v432
      %469 = vmatpush.bf16.msra.mxu0 %v431
      %470 = vmatpush.bf16.msra.mxu0 %v430
      %471 = vmatmul.bf16.gmra.mxu0 %v440
      %v472 = vpop.f32.mrf.mxu0
      %v473 = vadd.f32 %v412, %v472
      %v474 = vpop.f32.mrf.mxu0
      %v475 = vadd.f32 %v412, %v474
      %476 = vmatmul.bf16.gmra.mxu0 %v443
      %v477 = vpop.f32.mrf.mxu0
      %v478 = vadd.f32 %v412, %v477
      %v479 = vpop.f32.mrf.mxu0
      %v480 = vadd.f32 %v412, %v479
      %481 = vmatmul.bf16.gmra.mxu0 %v446
      %v482 = vpop.f32.mrf.mxu0
      %v483 = vadd.f32 %v412, %v482
      %v484 = vpop.f32.mrf.mxu0
      %v485 = vadd.f32 %v412, %v484
      %486 = vmatmul.bf16.gmra.mxu0 %v449
      %v487 = vpop.f32.mrf.mxu0
      %v488 = vadd.f32 %v412, %v487
      %v489 = vpop.f32.mrf.mxu0
      %v490 = vadd.f32 %v412, %v489
      %491 = vmatmul.bf16.gmra.mxu0 %v452
      %v492 = vpop.f32.mrf.mxu0
      %v493 = vadd.f32 %v412, %v492
      %v494 = vpop.f32.mrf.mxu0
      %v495 = vadd.f32 %v412, %v494
      %496 = vmatmul.bf16.gmra.mxu0 %v455
      %v497 = vpop.f32.mrf.mxu0
      %v498 = vadd.f32 %v412, %v497
      %v499 = vpop.f32.mrf.mxu0
      %v500 = vadd.f32 %v412, %v499
      %501 = vmatmul.bf16.gmra.mxu0 %v458
      %v502 = vpop.f32.mrf.mxu0
      %v503 = vadd.f32 %v412, %v502
      %v504 = vpop.f32.mrf.mxu0
      %v505 = vadd.f32 %v412, %v504
      %506 = vmatmul.bf16.gmra.mxu0 %v461
      %v507 = vpop.f32.mrf.mxu0
      %v508 = vadd.f32 %v412, %v507
      %v509 = vpop.f32.mrf.mxu0
      %v510 = vadd.f32 %v412, %v509
      %511 = vdwg.mxu0
      %v512 = vmax.f32 %v473, 0.0
      %v513 = vmax.f32 %v475, 0.0
      %v514 = vmax.f32 %v478, 0.0
      %v515 = vmax.f32 %v480, 0.0
      %v516 = vmax.f32 %v483, 0.0
      %v517 = vmax.f32 %v485, 0.0
      %v518 = vmax.f32 %v488, 0.0
      %v519 = vmax.f32 %v490, 0.0
      %v520 = vmax.f32 %v493, 0.0
      %v521 = vmax.f32 %v495, 0.0
      %v522 = vmax.f32 %v498, 0.0
      %v523 = vmax.f32 %v500, 0.0
      %v524 = vmax.f32 %v503, 0.0
      %v525 = vmax.f32 %v505, 0.0
      %v526 = vmax.f32 %v508, 0.0
      %v527 = vmax.f32 %v510, 0.0
      %v528 = vpack.c.bf16 %v513, %v512
      %v529 = vpack.c.bf16 %v515, %v514
      %v530 = vpack.c.bf16 %v517, %v516
      %v531 = vpack.c.bf16 %v519, %v518
      %v532 = vpack.c.bf16 %v521, %v520
      %v533 = vpack.c.bf16 %v523, %v522
      %v534 = vpack.c.bf16 %v525, %v524
      %v535 = vpack.c.bf16 %v527, %v526
      %v536 = vld [vmem:[%s3] sm:$0xf]
      %v537 = vld [vmem:[%s3 + $0x4] sm:$0xf]
      %v538 = vld [vmem:[%s3 + $0x8] sm:$0xf]
      %v539 = vld [vmem:[%s3 + $0xc] sm:$0xf]
      %v540 = vld [vmem:[%s3 + $0x10] sm:$0xf]
      %v541 = vld [vmem:[%s3 + $0x14] sm:$0xf]
      %v542 = vld [vmem:[%s4] sm:$0x1]
      %v544 = vperm.slane %v542, 0
      %v552 = vunpack.c.l.b16 %v536
      %v553 = vunpack.c.l.b16 %v537
      %v554 = vunpack.c.l.b16 %v538
      %v555 = vunpack.c.l.b16 %v539
      %v556 = vunpack.c.l.b16 %v540
      %v557 = vunpack.c.l.b16 %v541
      %v558 = vpack.c.b16 %v553, %v552
      %v559 = vpack.c.b16 %v555, %v554
      %v560 = vpack.c.b16 %v557, %v556
      %vm564 = vcmask 392192
      %v566 = vsel %vm564, %v528, 0
      %v569 = vsel %vm564, %v529, 0
      %v572 = vsel %vm564, %v530, 0
      %v575 = vsel %vm564, %v531, 0
      %v578 = vsel %vm564, %v532, 0
      %v581 = vsel %vm564, %v533, 0
      %v584 = vsel %vm564, %v534, 0
      %v587 = vsel %vm564, %v535, 0
      %589 = vmatpush.bf16.msra.mxu0 0
      %590 = vmatpush.bf16.msra.mxu0 0
      %591 = vmatpush.bf16.msra.mxu0 0
      %592 = vmatpush.bf16.msra.mxu0 0
      %593 = vmatpush.bf16.msra.mxu0 0
      %594 = vmatpush.bf16.msra.mxu0 %v560
      %595 = vmatpush.bf16.msra.mxu0 %v559
      %596 = vmatpush.bf16.msra.mxu0 %v558
      %597 = vmatmul.bf16.gmra.mxu0 %v566
      %v598 = vpop.f32.mrf.mxu0
      %v599 = vadd.f32 %v544, %v598
      %v600 = vpop.f32.mrf.mxu0
      %v601 = vadd.f32 %v544, %v600
      %602 = vmatmul.bf16.gmra.mxu0 %v569
      %v603 = vpop.f32.mrf.mxu0
      %v604 = vadd.f32 %v544, %v603
      %v605 = vpop.f32.mrf.mxu0
      %v606 = vadd.f32 %v544, %v605
      %607 = vmatmul.bf16.gmra.mxu0 %v572
      %v608 = vpop.f32.mrf.mxu0
      %v609 = vadd.f32 %v544, %v608
      %v610 = vpop.f32.mrf.mxu0
      %v611 = vadd.f32 %v544, %v610
      %612 = vmatmul.bf16.gmra.mxu0 %v575
      %v613 = vpop.f32.mrf.mxu0
      %v614 = vadd.f32 %v544, %v613
      %v615 = vpop.f32.mrf.mxu0
      %v616 = vadd.f32 %v544, %v615
      %617 = vmatmul.bf16.gmra.mxu0 %v578
      %v618 = vpop.f32.mrf.mxu0
      %v619 = vadd.f32 %v544, %v618
      %v620 = vpop.f32.mrf.mxu0
      %v621 = vadd.f32 %v544, %v620
      %622 = vmatmul.bf16.gmra.mxu0 %v581
      %v623 = vpop.f32.mrf.mxu0
      %v624 = vadd.f32 %v544, %v623
      %v625 = vpop.f32.mrf.mxu0
      %v626 = vadd.f32 %v544, %v625
      %627 = vmatmul.bf16.gmra.mxu0 %v584
      %v628 = vpop.f32.mrf.mxu0
      %v629 = vadd.f32 %v544, %v628
      %v630 = vpop.f32.mrf.mxu0
      %v631 = vadd.f32 %v544, %v630
      %632 = vmatmul.bf16.gmra.mxu0 %v587
      %v633 = vpop.f32.mrf.mxu0
      %v634 = vadd.f32 %v544, %v633
      %v635 = vpop.f32.mrf.mxu0
      %v636 = vadd.f32 %v544, %v635
      %637 = vdwg.mxu0
      %v638 = vmax.f32 %v599, 0.0
      %v639 = vmax.f32 %v601, 0.0
      %v640 = vmax.f32 %v604, 0.0
      %v641 = vmax.f32 %v606, 0.0
      %v642 = vmax.f32 %v609, 0.0
      %v643 = vmax.f32 %v611, 0.0
      %v644 = vmax.f32 %v614, 0.0
      %v645 = vmax.f32 %v616, 0.0
      %v646 = vmax.f32 %v619, 0.0
      %v647 = vmax.f32 %v621, 0.0
      %v648 = vmax.f32 %v624, 0.0
      %v649 = vmax.f32 %v626, 0.0
      %v650 = vmax.f32 %v629, 0.0
      %v651 = vmax.f32 %v631, 0.0
      %v652 = vmax.f32 %v634, 0.0
      %v653 = vmax.f32 %v636, 0.0
      %v654 = vpack.c.bf16 %v639, %v638
      %v655 = vpack.c.bf16 %v641, %v640
      %v656 = vpack.c.bf16 %v643, %v642
      %v657 = vpack.c.bf16 %v645, %v644
      %v658 = vpack.c.bf16 %v647, %v646
      %v659 = vpack.c.bf16 %v649, %v648
      %v660 = vpack.c.bf16 %v651, %v650
      %v661 = vpack.c.bf16 %v653, %v652
      %v662 = vld [vmem:[%s5] sm:$0xf]
      %v663 = vld [vmem:[%s5 + $0x4] sm:$0xf]
      %v664 = vld [vmem:[%s5 + $0x8] sm:$0xf]
      %v665 = vld [vmem:[%s5 + $0xc] sm:$0xf]
      %v666 = vld [vmem:[%s6] sm:$0x1]
      %v668 = vperm.slane %v666, 0
      %v674 = vunpack.c.l.b16 %v662
      %v675 = vunpack.c.l.b16 %v663
      %v676 = vunpack.c.l.b16 %v664
      %v677 = vunpack.c.l.b16 %v665
      %v678 = vpack.c.b16 %v675, %v674
      %v679 = vpack.c.b16 %v677, %v676
      %vm682 = vcmask 261120
      %v684 = vsel %vm682, %v654, 0
      %v687 = vsel %vm682, %v655, 0
      %v690 = vsel %vm682, %v656, 0
      %v693 = vsel %vm682, %v657, 0
      %v696 = vsel %vm682, %v658, 0
      %v699 = vsel %vm682, %v659, 0
      %v702 = vsel %vm682, %v660, 0
      %v705 = vsel %vm682, %v661, 0
      %707 = vmatpush.bf16.msra.mxu0 0
      %708 = vmatpush.bf16.msra.mxu0 0
      %709 = vmatpush.bf16.msra.mxu0 0
      %710 = vmatpush.bf16.msra.mxu0 0
      %711 = vmatpush.bf16.msra.mxu0 0
      %712 = vmatpush.bf16.msra.mxu0 0
      %713 = vmatpush.bf16.msra.mxu0 %v679
      %714 = vmatpush.bf16.msra.mxu0 %v678
      %715 = vmatmul.bf16.gmra.mxu0 %v684
      %v716 = vpop.f32.mrf.mxu0
      %v717 = vadd.f32 %v668, %v716
      %v718 = vpop.f32.mrf.mxu0
      %v719 = vadd.f32 %v668, %v718
      %720 = vmatmul.bf16.gmra.mxu0 %v687
      %v721 = vpop.f32.mrf.mxu0
      %v722 = vadd.f32 %v668, %v721
      %v723 = vpop.f32.mrf.mxu0
      %v724 = vadd.f32 %v668, %v723
      %725 = vmatmul.bf16.gmra.mxu0 %v690
      %v726 = vpop.f32.mrf.mxu0
      %v727 = vadd.f32 %v668, %v726
      %v728 = vpop.f32.mrf.mxu0
      %v729 = vadd.f32 %v668, %v728
      %730 = vmatmul.bf16.gmra.mxu0 %v693
      %v731 = vpop.f32.mrf.mxu0
      %v732 = vadd.f32 %v668, %v731
      %v733 = vpop.f32.mrf.mxu0
      %v734 = vadd.f32 %v668, %v733
      %735 = vmatmul.bf16.gmra.mxu0 %v696
      %v736 = vpop.f32.mrf.mxu0
      %v737 = vadd.f32 %v668, %v736
      %v738 = vpop.f32.mrf.mxu0
      %v739 = vadd.f32 %v668, %v738
      %740 = vmatmul.bf16.gmra.mxu0 %v699
      %v741 = vpop.f32.mrf.mxu0
      %v742 = vadd.f32 %v668, %v741
      %v743 = vpop.f32.mrf.mxu0
      %v744 = vadd.f32 %v668, %v743
      %745 = vmatmul.bf16.gmra.mxu0 %v702
      %v746 = vpop.f32.mrf.mxu0
      %v747 = vadd.f32 %v668, %v746
      %v748 = vpop.f32.mrf.mxu0
      %v749 = vadd.f32 %v668, %v748
      %750 = vmatmul.bf16.gmra.mxu0 %v705
      %v751 = vpop.f32.mrf.mxu0
      %v752 = vadd.f32 %v668, %v751
      %v753 = vpop.f32.mrf.mxu0
      %v754 = vadd.f32 %v668, %v753
      %755 = vdwg.mxu0
      %v756 = vmax.f32 %v717, 0.0
      %v757 = vmax.f32 %v719, 0.0
      %v758 = vmax.f32 %v722, 0.0
      %v759 = vmax.f32 %v724, 0.0
      %v760 = vmax.f32 %v727, 0.0
      %v761 = vmax.f32 %v729, 0.0
      %v762 = vmax.f32 %v732, 0.0
      %v763 = vmax.f32 %v734, 0.0
      %v764 = vmax.f32 %v737, 0.0
      %v765 = vmax.f32 %v739, 0.0
      %v766 = vmax.f32 %v742, 0.0
      %v767 = vmax.f32 %v744, 0.0
      %v768 = vmax.f32 %v747, 0.0
      %v769 = vmax.f32 %v749, 0.0
      %v770 = vmax.f32 %v752, 0.0
      %v771 = vmax.f32 %v754, 0.0
      %v772 = vpack.c.bf16 %v757, %v756
      %v773 = vpack.c.bf16 %v759, %v758
      %v774 = vpack.c.bf16 %v761, %v760
      %v775 = vpack.c.bf16 %v763, %v762
      %v776 = vpack.c.bf16 %v765, %v764
      %v777 = vpack.c.bf16 %v767, %v766
      %v778 = vpack.c.bf16 %v769, %v768
      %v779 = vpack.c.bf16 %v771, %v770
      %v780 = vld [vmem:[%s7] sm:$0xf]
      %v781 = vld [vmem:[%s7 + $0x4] sm:$0xf]
      %v782 = vld [vmem:[%s7 + $0x8] sm:$0xf]
      %v783 = vld [vmem:[%s7 + $0xc] sm:$0xf]
      %v784 = vld [vmem:[%s7 + $0x10] sm:$0xf]
      %v785 = vld [vmem:[%s7 + $0x14] sm:$0xf]
      %v786 = vld [vmem:[%s8] sm:$0x1]
      %v788 = vperm.slane %v786, 0
      %v796 = vunpack.c.l.b16 %v780
      %v797 = vunpack.c.l.b16 %v781
      %v798 = vunpack.c.l.b16 %v782
      %v799 = vunpack.c.l.b16 %v783
      %v800 = vunpack.c.l.b16 %v784
      %v801 = vunpack.c.l.b16 %v785
      %v802 = vpack.c.b16 %v797, %v796
      %v803 = vpack.c.b16 %v799, %v798
      %v804 = vpack.c.b16 %v801, %v800
      %v809 = vsel %vm564, %v772, 0
      %v812 = vsel %vm564, %v773, 0
      %v815 = vsel %vm564, %v774, 0
      %v818 = vsel %vm564, %v775, 0
      %v821 = vsel %vm564, %v776, 0
      %v824 = vsel %vm564, %v777, 0
      %v827 = vsel %vm564, %v778, 0
      %v830 = vsel %vm564, %v779, 0
      %832 = vmatpush.bf16.msra.mxu0 0
      %833 = vmatpush.bf16.msra.mxu0 0
      %834 = vmatpush.bf16.msra.mxu0 0
      %835 = vmatpush.bf16.msra.mxu0 0
      %836 = vmatpush.bf16.msra.mxu0 0
      %837 = vmatpush.bf16.msra.mxu0 %v804
      %838 = vmatpush.bf16.msra.mxu0 %v803
      %839 = vmatpush.bf16.msra.mxu0 %v802
      %840 = vmatmul.bf16.gmra.mxu0 %v809
      %v841 = vpop.f32.mrf.mxu0
      %v842 = vadd.f32 %v788, %v841
      %v843 = vpop.f32.mrf.mxu0
      %v844 = vadd.f32 %v788, %v843
      %845 = vmatmul.bf16.gmra.mxu0 %v812
      %v846 = vpop.f32.mrf.mxu0
      %v847 = vadd.f32 %v788, %v846
      %v848 = vpop.f32.mrf.mxu0
      %v849 = vadd.f32 %v788, %v848
      %850 = vmatmul.bf16.gmra.mxu0 %v815
      %v851 = vpop.f32.mrf.mxu0
      %v852 = vadd.f32 %v788, %v851
      %v853 = vpop.f32.mrf.mxu0
      %v854 = vadd.f32 %v788, %v853
      %855 = vmatmul.bf16.gmra.mxu0 %v818
      %v856 = vpop.f32.mrf.mxu0
      %v857 = vadd.f32 %v788, %v856
      %v858 = vpop.f32.mrf.mxu0
      %v859 = vadd.f32 %v788, %v858
      %860 = vmatmul.bf16.gmra.mxu0 %v821
      %v861 = vpop.f32.mrf.mxu0
      %v862 = vadd.f32 %v788, %v861
      %v863 = vpop.f32.mrf.mxu0
      %v864 = vadd.f32 %v788, %v863
      %865 = vmatmul.bf16.gmra.mxu0 %v824
      %v866 = vpop.f32.mrf.mxu0
      %v867 = vadd.f32 %v788, %v866
      %v868 = vpop.f32.mrf.mxu0
      %v869 = vadd.f32 %v788, %v868
      %870 = vmatmul.bf16.gmra.mxu0 %v827
      %v871 = vpop.f32.mrf.mxu0
      %v872 = vadd.f32 %v788, %v871
      %v873 = vpop.f32.mrf.mxu0
      %v874 = vadd.f32 %v788, %v873
      %875 = vmatmul.bf16.gmra.mxu0 %v830
      %v876 = vpop.f32.mrf.mxu0
      %v877 = vadd.f32 %v788, %v876
      %v878 = vpop.f32.mrf.mxu0
      %v879 = vadd.f32 %v788, %v878
      %880 = vdwg.mxu0
      %881 = vst.msk [vmem:[%s369] sm:$0xff] %vm682, %v638
      %882 = vst.msk [vmem:[%s369 + $0x8] sm:$0xff] %vm682, %v639
      %883 = vst.msk [vmem:[%s369 + $0x10] sm:$0xff] %vm682, %v640
      %884 = vst.msk [vmem:[%s369 + $0x18] sm:$0xff] %vm682, %v641
      %885 = vst.msk [vmem:[%s369 + $0x20] sm:$0xff] %vm682, %v642
      %886 = vst.msk [vmem:[%s369 + $0x28] sm:$0xff] %vm682, %v643
      %887 = vst.msk [vmem:[%s369 + $0x30] sm:$0xff] %vm682, %v644
      %888 = vst.msk [vmem:[%s369 + $0x38] sm:$0xff] %vm682, %v645
      %889 = vst.msk [vmem:[%s369 + $0x40] sm:$0xff] %vm682, %v646
      %890 = vst.msk [vmem:[%s369 + $0x48] sm:$0xff] %vm682, %v647
      %891 = vst.msk [vmem:[%s369 + $0x50] sm:$0xff] %vm682, %v648
      %892 = vst.msk [vmem:[%s369 + $0x58] sm:$0xff] %vm682, %v649
      %893 = vst.msk [vmem:[%s369 + $0x60] sm:$0xff] %vm682, %v650
      %894 = vst.msk [vmem:[%s369 + $0x68] sm:$0xff] %vm682, %v651
      %895 = vst.msk [vmem:[%s369 + $0x70] sm:$0xff] %vm682, %v652
      %896 = vst.msk [vmem:[%s369 + $0x78] sm:$0xff] %vm682, %v653
      %897 = vst.msk [vmem:[%s375] sm:$0xff] %vm438, %v842
      %898 = vst.msk [vmem:[%s375 + $0x8] sm:$0xff] %vm438, %v844
      %899 = vst.msk [vmem:[%s375 + $0x10] sm:$0xff] %vm438, %v847
      %900 = vst.msk [vmem:[%s375 + $0x18] sm:$0xff] %vm438, %v849
      %901 = vst.msk [vmem:[%s375 + $0x20] sm:$0xff] %vm438, %v852
      %902 = vst.msk [vmem:[%s375 + $0x28] sm:$0xff] %vm438, %v854
      %903 = vst.msk [vmem:[%s375 + $0x30] sm:$0xff] %vm438, %v857
      %904 = vst.msk [vmem:[%s375 + $0x38] sm:$0xff] %vm438, %v859
      %905 = vst.msk [vmem:[%s375 + $0x40] sm:$0xff] %vm438, %v862
      %906 = vst.msk [vmem:[%s375 + $0x48] sm:$0xff] %vm438, %v864
      %907 = vst.msk [vmem:[%s375 + $0x50] sm:$0xff] %vm438, %v867
      %908 = vst.msk [vmem:[%s375 + $0x58] sm:$0xff] %vm438, %v869
      %909 = vst.msk [vmem:[%s375 + $0x60] sm:$0xff] %vm438, %v872
      %910 = vst.msk [vmem:[%s375 + $0x68] sm:$0xff] %vm438, %v874
      %911 = vst.msk [vmem:[%s375 + $0x70] sm:$0xff] %vm438, %v877
      %912 = vst.msk [vmem:[%s375 + $0x78] sm:$0xff] %vm438, %v879
      %s913 = smul.u32 16, %s22
      %p914 = scmp.lt.s32.totalorder %s913, 31
      %s915 = scalar_select %p914, %s913, 31
      %s916 = smul.addr %s915, 8
      %s917 = scalar_lea.vmem %s9, %s916
      %s918 = smul.u32 16, %s22
      %p919 = scmp.lt.s32.totalorder %s918, 31
      %s920 = scalar_select %p919, %s918, 31
      %s921 = smul.addr %s920, 8
      %s922 = scalar_lea.vmem %s10, %s921
      // Predicated region
      $region57: #{tpu_custom_call.1} parent=55 // pred_check
        %p923 = pneg %p234
      $region58: #{tpu_custom_call.1} parent=55 // pred_check_branch
        %925 = sbr.rel (%p923) target = $region60
      $region59: #{tpu_custom_call.1} parent=55 // pred_region
        %s926 = smul.u32 16, %s22
      $region60: #{tpu_custom_call.1} parent=55 // pred_fallthru
        _
      // Predicated region
      $region61: #{tpu_custom_call.1} parent=55 // pred_check
        %p927 = pneg %p260
      $region62: #{tpu_custom_call.1} parent=55 // pred_check_branch
        %929 = sbr.rel (%p927) target = $region64
      $region63: #{tpu_custom_call.1} parent=55 // pred_region
        %s930 = smul.u32 16, %s22
      $region64: #{tpu_custom_call.1} parent=55 // pred_fallthru
        _
    $region56: #{tpu_custom_call.1} parent=5 // pred_fallthru
      _
    %p931 = scmp.le.s32.totalorder 2, %s17
    // Predicated region
    $region65: #{tpu_custom_call.1} parent=5 // pred_check
      %p932 = pneg %p931
    $region66: #{tpu_custom_call.1} parent=5 // pred_check_branch
      %934 = sbr.rel (%p932) target = $region68
    $region67: #{tpu_custom_call.1} parent=5 // pred_region
      %s935 = ssub.s32 %s17, 2
      // Predicated region
      $region69: #{tpu_custom_call.1} parent=67 // pred_check
        %p936 = pneg %p240
      $region70: #{tpu_custom_call.1} parent=67 // pred_check_branch
        %938 = sbr.rel (%p936) target = $region72
      $region71: #{tpu_custom_call.1} parent=67 // pred_region
        %s939 = smul.u32 16, %s23
        %p940 = scmp.lt.s32.totalorder %s939, 31
        %s941 = scalar_select %p940, %s939, 31
        %s942 = smul.addr %s941, 8
        %s943 = scalar_lea.vmem %s9, %s942
      $region72: #{tpu_custom_call.1} parent=67 // pred_fallthru
        _
      // Predicated region
      $region73: #{tpu_custom_call.1} parent=67 // pred_check
        %p944 = pneg %p266
      $region74: #{tpu_custom_call.1} parent=67 // pred_check_branch
        %946 = sbr.rel (%p944) target = $region76
      $region75: #{tpu_custom_call.1} parent=67 // pred_region
        %s947 = smul.u32 16, %s23
        %p948 = scmp.lt.s32.totalorder %s947, 31
        %s949 = scalar_select %p948, %s947, 31
        %s950 = smul.addr %s949, 8
        %s951 = scalar_lea.vmem %s10, %s950
      $region76: #{tpu_custom_call.1} parent=67 // pred_fallthru
        _
    $region68: #{tpu_custom_call.1} parent=5 // pred_fallthru
      _
  $region6: #{tpu_custom_call.1} parent=0 // loop_footer
    %s21 = sadd.s32 1, %s17
  $region7: #{tpu_custom_call.1} parent=0 // loop_footer_branch
    %16 = sbr.rel target = $region3
  $region8: #{tpu_custom_call.1} parent=0 // loop_exit
    _

</llo_original>
